<compile_context>
chip_gen: v7x
topology: tpu7x:2x2x1
jax: 0.10.0
libtpu: 0.0.40
codegen_flags: <defaults>
</compile_context>

<pallas_src>
import numpy as np
import jax
import jax.numpy as jnp
from jax.experimental import pallas as pl
from jax.experimental.pallas import tpu as pltpu


def build_grid(resolution):
    """Identical to the PyTorch build_grid, returning a jnp array (1, 4, H, W)."""
    ranges = [np.linspace(0.0, 1.0, num=res) for res in resolution]
    grid = np.meshgrid(*ranges, sparse=False, indexing='ij')
    grid = np.stack(grid, axis=0)
    grid = np.reshape(grid, [-1, resolution[0], resolution[1]])
    grid = np.expand_dims(grid, axis=0).astype(np.float32)
    res = np.concatenate([grid, 1.0 - grid], axis=-3)
    return jnp.asarray(res)  # (1, 4, H, W), float32


# ----------------------------- kernels ---------------------------------------

def _soft_pos_embed_tile_kernel(x_ref, g_ref, w_ref, o_ref):
    # x_ref/o_ref: (C, THW); g_ref: (5, THW); w_ref: (C, 5)  [bias folded in]
    dense = jnp.dot(w_ref[...], g_ref[...], preferred_element_type=jnp.float32)
    o_ref[...] = (x_ref[...].astype(jnp.float32) + dense).astype(o_ref.dtype)


def _soft_pos_embed_fused_kernel(x_ref, g_ref, w_ref, o_ref):
    # Whole problem in one block: x_ref/o_ref: (B, C, HW); g_ref: (5, HW); w_ref: (C, 5)
    dense = jnp.dot(w_ref[...], g_ref[...], preferred_element_type=jnp.float32)
    o_ref[...] = (x_ref[...].astype(jnp.float32) + dense[None]).astype(o_ref.dtype)


def _broadcast_add_kernel(x_ref, d_ref, o_ref):
    # Lane-sparse fallback: x_ref/o_ref: (B, TN); d_ref: (1, TN) f32 (precomputed dense)
    o_ref[...] = (x_ref[...].astype(jnp.float32) + d_ref[...]).astype(o_ref.dtype)


# ----------------------------- wrapper ----------------------------------------

def _pick_hw_tile(HW, C, acct_itemsize, budget_bytes):
    """Largest 128-multiple spatial tile whose (C, tile) block stays under budget
    (f32-equivalent accounting so in-kernel f32 temporaries are covered).  If the
    budget allows the full extent, use HW itself (a full-extent block is always legal
    even when HW is not a multiple of 128)."""
    t = (budget_bytes // (C * acct_itemsize)) // 128 * 128
    t = max(t, 128)
    return HW if t >= HW else t


def soft_position_embed(inputs_nchw, grid_nchw, weight_oi, bias, *,
                        block_budget_bytes=4 << 20,
                        vmem_limit_bytes=40 << 20,
                        donate_inputs=False):
    """inputs_nchw: (B, C, H, W); grid_nchw: (1, 4, H, W);
    weight_oi: (C, 4) PyTorch Linear weight; bias: (C,).  Returns (B, C, H, W)."""
    B, C, H, W = inputs_nchw.shape
    HW = H * W
    itemsize = jnp.dtype(inputs_nchw.dtype).itemsize
    acct = max(itemsize, 4)  # account f32 temporaries (dense, upcast add) in the budget

    # Layout plumbing: free reshapes only, no transposes / no extra HBM traffic.
    x = inputs_nchw.reshape(B, C, HW)                                   # (B, C, HW)
    g4 = grid_nchw.reshape(4, HW).astype(jnp.float32)                   # (4, HW)
    # Fold the bias into the matmul: K goes 4 -> 5, still trivially under the MXU.
    w5 = jnp.concatenate([weight_oi.astype(jnp.float32),
                          bias.astype(jnp.float32)[:, None]], axis=1)   # (C, 5)
    g5 = jnp.concatenate([g4, jnp.ones((1, HW), jnp.float32)], axis=0)  # (5, HW)

    cost = pl.CostEstimate(
        flops=2 * 5 * C * HW * B + B * C * HW,
        transcendentals=0,
        bytes_accessed=2 * B * C * HW * itemsize + 5 * HW * 4 + C * 5 * 4)
    io_alias = {0: 0} if donate_inputs else {}
    total_f32_bytes = B * C * HW * acct

    # ---- small-problem fast path: one fused block, batch folded, dense computed once
    if total_f32_bytes <= block_budget_bytes:
        out = pl.pallas_call(
            _soft_pos_embed_fused_kernel,
            out_shape=jax.ShapeDtypeStruct((B, C, HW), x.dtype),
            grid_spec=pl.GridSpec(
                grid=(1,),
                in_specs=[pl.BlockSpec((B, C, HW), lambda i: (0, 0, 0)),
                          pl.BlockSpec((5, HW), lambda i: (0, 0)),
                          pl.BlockSpec((C, 5), lambda i: (0, 0))],
                out_specs=pl.BlockSpec((B, C, HW), lambda i: (0, 0, 0))),
            compiler_params=pltpu.CompilerParams(
                dimension_semantics=("arbitrary",),
                vmem_limit_bytes=vmem_limit_bytes),
            cost_estimate=cost,
            input_output_aliases=io_alias,
        )(x, g5, w5)
        return out.reshape(B, C, H, W)

    # ---- general path: spatial axis on lanes (HW >= 128), 128-aligned tiles, cdiv grid
    if HW >= 128:
        thw = _pick_hw_tile(HW, C, acct, block_budget_bytes)
        n_hw = pl.cdiv(HW, thw)
        if n_hw >= B:
            # Put the bigger axis first so both v7x TensorCores get steps even when B == 1.
            grid = (n_hw, B)
            x_map = lambda j, bi: (bi, 0, j)
            g_map = lambda j, bi: (0, j)
            w_map = lambda j, bi: (0, 0)
        else:
            grid = (B, n_hw)
            x_map = lambda bi, j: (bi, 0, j)
            g_map = lambda bi, j: (0, j)
            w_map = lambda bi, j: (0, 0)
        out = pl.pallas_call(
            _soft_pos_embed_tile_kernel,
            out_shape=jax.ShapeDtypeStruct((B, C, HW), x.dtype),
            grid_spec=pl.GridSpec(
                grid=grid,
                in_specs=[
                    # leading batch dim squeezed -> kernel sees clean 2D (C, THW) refs
                    pl.BlockSpec((None, C, thw), x_map),
                    pl.BlockSpec((5, thw), g_map),
                    pl.BlockSpec((C, 5), w_map),
                ],
                out_specs=pl.BlockSpec((None, C, thw), x_map)),
            compiler_params=pltpu.CompilerParams(
                dimension_semantics=("parallel", "parallel"),
                vmem_limit_bytes=vmem_limit_bytes),
            cost_estimate=cost,
            input_output_aliases=io_alias,
        )(x, g5, w5)
        return out.reshape(B, C, H, W)

    # ---- lane-sparse fallback (HW < 128 but too large to fuse): precompute dense once
    # in the wrapper (tiny) and present a lane-dense flattened (B, C*HW) slab so stores
    # are full-width unmasked vst.
    dense = (w5 @ g5).reshape(1, C * HW)            # (1, C*HW) f32
    x_flat = x.reshape(B, C * HW)                   # free reshape (contiguous)
    CHW = C * HW
    tn = (block_budget_bytes // (B * acct)) // 128 * 128
    tn = max(tn, 128)
    if tn >= CHW:
        tn = CHW
    n_t = pl.cdiv(CHW, tn)
    out = pl.pallas_call(
        _broadcast_add_kernel,
        out_shape=jax.ShapeDtypeStruct((B, CHW), x.dtype),
        grid_spec=pl.GridSpec(
            grid=(n_t,),
            in_specs=[pl.BlockSpec((B, tn), lambda j: (0, j)),
                      pl.BlockSpec((1, tn), lambda j: (0, j))],
            out_specs=pl.BlockSpec((B, tn), lambda j: (0, j))),
        compiler_params=pltpu.CompilerParams(
            dimension_semantics=("parallel",),
            vmem_limit_bytes=vmem_limit_bytes),
        cost_estimate=cost,
        input_output_aliases=io_alias,
    )(x_flat, dense)
    return out.reshape(B, C, H, W)


# ----------------------------- demo / self-check ------------------------------

if __name__ == "__main__":
    B, hidden, H, W = 2, 32, 16, 16

    key = jax.random.PRNGKey(0)
    k_in, k_w, k_b, k_in2, k_in3 = jax.random.split(key, 5)

    # Deterministic parameter init mimicking nn.Linear(4, hidden):
    # uniform(-1/sqrt(in_features), 1/sqrt(in_features)).
    bound = 1.0 / np.sqrt(4.0)
    weight = jax.random.uniform(k_w, (hidden, 4), jnp.float32, -bound, bound)
    bias = jax.random.uniform(k_b, (hidden,), jnp.float32, -bound, bound)

    def reference(inputs, grid, w, b):
        g_hw4 = jnp.transpose(grid, (0, 2, 3, 1))                 # (1, H, W, 4)
        dense = jnp.einsum('bhwi,oi->bhwo', g_hw4, w) + b          # (1, H, W, C)
        return inputs + jnp.transpose(dense, (0, 3, 1, 2))         # (B, C, H, W)

    # 1) Spec-shaped case -> fused single-block path.
    grid1 = build_grid((H, W))                                     # (1, 4, 16, 16)
    x1 = jax.random.normal(k_in, (B, hidden, H, W), jnp.float32)
    o1 = jax.block_until_ready(soft_position_embed(x1, grid1, weight, bias))
    assert o1.shape == (B, hidden, H, W)
    np.testing.assert_allclose(np.asarray(o1),
                               np.asarray(reference(x1, grid1, weight, bias)),
                               rtol=1e-5, atol=1e-5)

    # 2) Force the general tiled path (incl. a ragged last spatial tile, B == 1 so the
    #    spatial-tile axis leads the grid).
    H2 = W2 = 40
    grid2 = build_grid((H2, W2))
    x2 = jax.random.normal(k_in2, (1, hidden, H2, W2), jnp.float32)
    o2 = jax.block_until_ready(
        soft_position_embed(x2, grid2, weight, bias, block_budget_bytes=64 << 10))
    np.testing.assert_allclose(np.asarray(o2),
                               np.asarray(reference(x2, grid2, weight, bias)),
                               rtol=1e-5, atol=1e-5)

    # 3) Force the lane-sparse fallback path (HW < 128, doesn't fit the fused budget).
    H3 = W3 = 8
    grid3 = build_grid((H3, W3))
    x3 = jax.random.normal(k_in3, (4, hidden, H3, W3), jnp.float32)
    o3 = jax.block_until_ready(
        soft_position_embed(x3, grid3, weight, bias, block_budget_bytes=16 << 10))
    np.testing.assert_allclose(np.asarray(o3),
                               np.asarray(reference(x3, grid3, weight, bias)),
                               rtol=1e-5, atol=1e-5)

    print("KERNEL_OK")
</pallas_src>

<mosaic_0001>
module attributes {stable_mosaic.version = 11 : i64} {
  func.func @_soft_pos_embed_fused_kernel(%arg0: i32, %arg1: memref<2x32x256xf32, #tpu.memory_space<vmem>>, %arg2: memref<5x256xf32, #tpu.memory_space<vmem>>, %arg3: memref<32x5xf32, #tpu.memory_space<vmem>>, %arg4: memref<2x32x256xf32, #tpu.memory_space<vmem>>) attributes {dimension_semantics = [#tpu.dimension_semantics<arbitrary>], iteration_bounds = array<i64: 1>, scalar_prefetch = 0 : i64, scratch_operands = 0 : i64, tpu.core_type = #tpu.core_type<tc>, window_params = [{pipeline_mode = #tpu.pipeline_mode<synchronous>, transform_indices = @transform_0, window_bounds = array<i64: 2, 32, 256>}, {pipeline_mode = #tpu.pipeline_mode<synchronous>, transform_indices = @transform_1, window_bounds = array<i64: 5, 256>}, {pipeline_mode = #tpu.pipeline_mode<synchronous>, transform_indices = @transform_2, window_bounds = array<i64: 32, 5>}, {pipeline_mode = #tpu.pipeline_mode<synchronous>, transform_indices = @transform_3, window_bounds = array<i64: 2, 32, 256>}]} {
    %c0 = arith.constant 0 : index
    %c0_0 = arith.constant 0 : index
    %0 = vector.load %arg3[%c0, %c0_0] : memref<32x5xf32, #tpu.memory_space<vmem>>, vector<32x5xf32>
    %c0_1 = arith.constant 0 : index
    %c0_2 = arith.constant 0 : index
    %1 = vector.load %arg2[%c0_1, %c0_2] : memref<5x256xf32, #tpu.memory_space<vmem>>, vector<5x256xf32>
    %cst = arith.constant dense<0.000000e+00> : vector<32x256xf32>
    %2 = tpu.matmul %0, %1, %cst {dimension_numbers = #tpu.dot_dimension_numbers<[1], [0], [0], [1], [0, 0, 1, 1], [], []>} : vector<32x5xf32>, vector<5x256xf32>, vector<32x256xf32> -> vector<32x256xf32>
    %c0_3 = arith.constant 0 : index
    %c0_4 = arith.constant 0 : index
    %c0_5 = arith.constant 0 : index
    %3 = vector.load %arg1[%c0_3, %c0_4, %c0_5] : memref<2x32x256xf32, #tpu.memory_space<vmem>>, vector<2x32x256xf32>
    %4 = vector.shape_cast %2 : vector<32x256xf32> to vector<1x32x256xf32>
    %5 = vector.broadcast %4 : vector<1x32x256xf32> to vector<2x32x256xf32>
    %6 = arith.addf %3, %5 : vector<2x32x256xf32>
    %c0_6 = arith.constant 0 : index
    %c0_7 = arith.constant 0 : index
    %c0_8 = arith.constant 0 : index
    %7 = vector.load %arg4[%c0_6, %c0_7, %c0_8] : memref<2x32x256xf32, #tpu.memory_space<vmem>>, vector<2x32x256xf32>
    tpu.vector_store %arg4[%c0_6, %c0_7, %c0_8], %6 {strides = array<i32>} : memref<2x32x256xf32, #tpu.memory_space<vmem>>, vector<2x32x256xf32>,
    return
  }
  func.func @transform_0(%arg0: i32) -> (i32, i32, i32) {
    %c0_i32 = arith.constant 0 : i32
    %c0_i32_0 = arith.constant 0 : i32
    %c0_i32_1 = arith.constant 0 : i32
    %c0_i32_2 = arith.constant 0 : i32
    return %c0_i32, %c0_i32_0, %c0_i32_1 : i32, i32, i32
  }
  func.func @transform_1(%arg0: i32) -> (i32, i32) {
    %c0_i32 = arith.constant 0 : i32
    %c0_i32_0 = arith.constant 0 : i32
    %c0_i32_1 = arith.constant 0 : i32
    return %c0_i32, %c0_i32_0 : i32, i32
  }
  func.func @transform_2(%arg0: i32) -> (i32, i32) {
    %c0_i32 = arith.constant 0 : i32
    %c0_i32_0 = arith.constant 0 : i32
    %c0_i32_1 = arith.constant 0 : i32
    return %c0_i32, %c0_i32_0 : i32, i32
  }
  func.func @transform_3(%arg0: i32) -> (i32, i32, i32) {
    %c0_i32 = arith.constant 0 : i32
    %c0_i32_0 = arith.constant 0 : i32
    %c0_i32_1 = arith.constant 0 : i32
    %c0_i32_2 = arith.constant 0 : i32
    return %c0_i32, %c0_i32_0, %c0_i32_1 : i32, i32, i32
  }
}

</mosaic_0001>

<llo_original>
// kernel: tpu_custom_call.1
$region0: #{tpu_custom_call.1}
  #allocation0 [shape = 'u32[]', space=smem, size = 0x4, offset = 0x4, fixed_abs, tag = 'smem constant byte address 0x4 - core index']
  #allocation1 [shape = 'u32[144,128]{1,0:T(1,128)}', space=vmem, size = 0x12000, scoped, tag = 'internal scratch']
  %s0 = inlined_call_operand.hbm [shape: f32[2,32,256], index: 0, kind: input, shape index: {}]
  %s1 = inlined_call_operand.vmem [shape: f32[5,256], index: 1, kind: input, shape index: {}]
  %s2 = inlined_call_operand.vmem [shape: f32[32,5], index: 2, kind: input, shape index: {}]
  %s3 = inlined_call_operand.hbm [shape: f32[2,32,256], index: 3, kind: output, shape index: {}]
  %s4 = sld [smem:[#allocation0]]
  $region26: #{tpu_custom_call.1} parent=0
    _
  %s6 = ssub.s32 1, %s4
  %s7 = scalar_select 0, %s6, %s4
  $region1: #{tpu_custom_call.1} parent=0
    #allocation2 [shape = 'u8[65536]{0}', space=vmem, size = 0x10000, scoped, tag = 'input window, operand 0, single buffered']
    #allocation3 [shape = 's32[1]{0}', space=sflag, size = 0x4, scoped, tag = 'scoped memory for tpu_custom_call.1']
    #allocation4 [shape = 's32[1]{0}', space=sflag, size = 0x4, scoped, tag = 'scoped memory for tpu_custom_call.1']
    #allocation5 [shape = 'u8[65536]{0}', space=vmem, size = 0x10000, scoped, tag = 'output window, operand 0, single buffered']
    %8 = vsyncpa [#allocation3], 0
    %9 = vsyncpa [#allocation4], 0
    // Predicated region
    $region2: #{tpu_custom_call.1} parent=1 // pred_check
      _
    $region3: #{tpu_custom_call.1} parent=1 // pred_check_branch
      %11 = sbr.rel (0) target = $region5
    $region4: #{tpu_custom_call.1} parent=1 // pred_region
      %s13 = ssub.s32 2048, 2048
      %14 = vsyncadd [#allocation3], %s13
      %s15 = sshll.u32 [#allocation2], 4
      %s16 = int_to_ptr.vmem [resolvable:$true] %s15
      %21 = dma.hbm_to_vmem [thread:$0]  %s0, 2048, %s16, [#allocation3], 256, 256, 16
    $region5: #{tpu_custom_call.1} parent=1 // pred_fallthru
      _
    // Predicated region
    $region6: #{tpu_custom_call.1} parent=1 // pred_check
      _
    $region7: #{tpu_custom_call.1} parent=1 // pred_check_branch
      %23 = sbr.rel (0) target = $region9
    $region8: #{tpu_custom_call.1} parent=1 // pred_region
      _
    $region9: #{tpu_custom_call.1} parent=1 // pred_fallthru
      _
    // Predicated region
    $region10: #{tpu_custom_call.1} parent=1 // pred_check
      _
    $region11: #{tpu_custom_call.1} parent=1 // pred_check_branch
      %25 = sbr.rel (0) target = $region13
    $region12: #{tpu_custom_call.1} parent=1 // pred_region
      _
    $region13: #{tpu_custom_call.1} parent=1 // pred_fallthru
      _
    // Predicated region
    $region14: #{tpu_custom_call.1} parent=1 // pred_check
      _
    $region15: #{tpu_custom_call.1} parent=1 // pred_check_branch
      %27 = sbr.rel (0) target = $region17
    $region16: #{tpu_custom_call.1} parent=1 // pred_region
      %28 = dma.done [#allocation3], 2048
    $region17: #{tpu_custom_call.1} parent=1 // pred_fallthru
      _
    %v29 = vld [vmem:[%s2] sm:$0xff]
    %v30 = vld [vmem:[%s2 + $0x8] sm:$0xff]
    %v31 = vld [vmem:[%s2 + $0x10] sm:$0xff]
    %v32 = vld [vmem:[%s2 + $0x18] sm:$0xff]
    %v33 = vld [vmem:[%s1] sm:$0x1f]
    %v34 = vld [vmem:[%s1 + $0x8] sm:$0x1f]
    %vm35 = vcmask 39936
    %v37 = vsel %vm35, %v29, 0
    %v40 = vsel %vm35, %v30, 0
    %v43 = vsel %vm35, %v31, 0
    %v46 = vsel %vm35, %v32, 0
    %vm48 = vcmask 1044480
    %v50 = vsel %vm48, %v33, 0
    %v53 = vsel %vm48, %v34, 0
    %55 = vmatprep.subr.mxu0 %v53
    %56 = vmatpush1.msra.mxu0 %v50
    %57 = vmatprep.subr.mxu0 0.0
    %58 = vmatpush1.msra.mxu0 0.0
    %59 = vmatprep.subr.mxu0 0.0
    %60 = vmatpush1.msra.mxu0 0.0
    %61 = vmatprep.subr.mxu0 0.0
    %62 = vmatpush1.msra.mxu0 0.0
    %63 = vmatprep.subr.mxu0 0.0
    %64 = vmatpush1.msra.mxu0 0.0
    %65 = vmatprep.subr.mxu0 0.0
    %66 = vmatpush1.msra.mxu0 0.0
    %67 = vmatprep.subr.mxu0 0.0
    %68 = vmatpush1.msra.mxu0 0.0
    %69 = vmatprep.subr.mxu0 0.0
    %70 = vmatpush1.msra.mxu0 0.0
    %71 = vmatprep.subr.mxu0 0.0
    %72 = vmatpush1.msra.mxu0 0.0
    %73 = vmatprep.subr.mxu0 0.0
    %74 = vmatpush1.msra.mxu0 0.0
    %75 = vmatprep.subr.mxu0 0.0
    %76 = vmatpush1.msra.mxu0 0.0
    %77 = vmatprep.subr.mxu0 0.0
    %78 = vmatpush1.msra.mxu0 0.0
    %79 = vmatprep.subr.mxu0 0.0
    %80 = vmatpush1.msra.mxu0 0.0
    %81 = vmatprep.subr.mxu0 0.0
    %82 = vmatpush1.msra.mxu0 0.0
    %83 = vmatprep.subr.mxu0 0.0
    %84 = vmatpush1.msra.mxu0 0.0
    %85 = vmatprep.subr.mxu0 0.0
    %86 = vmatpush1.msra.mxu0 0.0
    %87 = vmatprep.subr.mxu0 0.0
    %88 = vmatpush1.msra.mxu0 0.0
    %89 = vmatprep.subr.mxu0 0.0
    %90 = vmatpush1.msra.mxu0 0.0
    %91 = vmatprep.subr.mxu0 0.0
    %92 = vmatpush1.msra.mxu0 0.0
    %93 = vmatprep.subr.mxu0 0.0
    %94 = vmatpush1.msra.mxu0 0.0
    %95 = vmatprep.subr.mxu0 0.0
    %96 = vmatpush1.msra.mxu0 0.0
    %97 = vmatprep.subr.mxu0 0.0
    %98 = vmatpush1.msra.mxu0 0.0
    %99 = vmatprep.subr.mxu0 0.0
    %100 = vmatpush1.msra.mxu0 0.0
    %101 = vmatprep.subr.mxu0 0.0
    %102 = vmatpush1.msra.mxu0 0.0
    %103 = vmatprep.subr.mxu0 0.0
    %104 = vmatpush1.msra.mxu0 0.0
    %105 = vmatprep.subr.mxu0 0.0
    %106 = vmatpush1.msra.mxu0 0.0
    %107 = vmatprep.subr.mxu0 0.0
    %108 = vmatpush1.msra.mxu0 0.0
    %109 = vmatprep.subr.mxu0 0.0
    %110 = vmatpush1.msra.mxu0 0.0
    %111 = vmatprep.subr.mxu0 0.0
    %112 = vmatpush1.msra.mxu0 0.0
    %113 = vmatprep.subr.mxu0 0.0
    %114 = vmatpush1.msra.mxu0 0.0
    %115 = vmatprep.subr.mxu0 0.0
    %116 = vmatpush1.msra.mxu0 0.0
    %117 = vmatprep.subr.mxu0 0.0
    %118 = vmatpush1.msra.mxu0 0.0
    %119 = vmatprep.mubr.f32.mxu0 0.0
    %120 = vmatmul.mubr.f32.gmra.mrb[0].mxu0 %v37
    %v121 = vpop.f32.mrb[0].mxu0
    %v122 = vadd.f32 0.0, %v121
    %v123 = vpop.f32.mrb[0].mxu0
    %v124 = vadd.f32 0.0, %v123
    %125 = vmatprep.mubr.f32.mxu0 0.0
    %126 = vmatmul.mubr.f32.gmra.mrb[0].mxu0 %v40
    %v127 = vpop.f32.mrb[0].mxu0
    %v128 = vadd.f32 0.0, %v127
    %v129 = vpop.f32.mrb[0].mxu0
    %v130 = vadd.f32 0.0, %v129
    %131 = vmatprep.mubr.f32.mxu0 0.0
    %132 = vmatmul.mubr.f32.gmra.mrb[0].mxu0 %v43
    %v133 = vpop.f32.mrb[0].mxu0
    %v134 = vadd.f32 0.0, %v133
    %v135 = vpop.f32.mrb[0].mxu0
    %v136 = vadd.f32 0.0, %v135
    %137 = vmatprep.mubr.f32.mxu0 0.0
    %138 = vmatmul.mubr.f32.gmra.mrb[0].mxu0 %v46
    %v139 = vpop.f32.mrb[0].mxu0
    %v140 = vadd.f32 0.0, %v139
    %v141 = vpop.f32.mrb[0].mxu0
    %v142 = vadd.f32 0.0, %v141
    %143 = vdwg.mxu0
    %v144 = vld [vmem:[#allocation2] sm:$0xff]
    %v145 = vld [vmem:[#allocation2 + $0x8] sm:$0xff]
    %v146 = vld [vmem:[#allocation2 + $0x10] sm:$0xff]
    %v147 = vld [vmem:[#allocation2 + $0x18] sm:$0xff]
    %v148 = vld [vmem:[#allocation2 + $0x20] sm:$0xff]
    %v149 = vld [vmem:[#allocation2 + $0x28] sm:$0xff]
    %v150 = vld [vmem:[#allocation2 + $0x30] sm:$0xff]
    %v151 = vld [vmem:[#allocation2 + $0x38] sm:$0xff]
    %v152 = vld [vmem:[#allocation2 + $0x40] sm:$0xff]
    %v153 = vld [vmem:[#allocation2 + $0x48] sm:$0xff]
    %v154 = vld [vmem:[#allocation2 + $0x50] sm:$0xff]
    %v155 = vld [vmem:[#allocation2 + $0x58] sm:$0xff]
    %v156 = vld [vmem:[#allocation2 + $0x60] sm:$0xff]
    %v157 = vld [vmem:[#allocation2 + $0x68] sm:$0xff]
    %v158 = vld [vmem:[#allocation2 + $0x70] sm:$0xff]
    %v159 = vld [vmem:[#allocation2 + $0x78] sm:$0xff]
    %v160 = vadd.f32 %v144, %v122
    %v161 = vadd.f32 %v145, %v124
    %v162 = vadd.f32 %v146, %v128
    %v163 = vadd.f32 %v147, %v130
    %v164 = vadd.f32 %v148, %v134
    %v165 = vadd.f32 %v149, %v136
    %v166 = vadd.f32 %v150, %v140
    %v167 = vadd.f32 %v151, %v142
    %v168 = vadd.f32 %v152, %v122
    %v169 = vadd.f32 %v153, %v124
    %v170 = vadd.f32 %v154, %v128
    %v171 = vadd.f32 %v155, %v130
    %v172 = vadd.f32 %v156, %v134
    %v173 = vadd.f32 %v157, %v136
    %v174 = vadd.f32 %v158, %v140
    %v175 = vadd.f32 %v159, %v142
    %176 = vst [vmem:[#allocation5] sm:$0xff] %v160
    %177 = vst [vmem:[#allocation5 + $0x8] sm:$0xff] %v161
    %178 = vst [vmem:[#allocation5 + $0x10] sm:$0xff] %v162
    %179 = vst [vmem:[#allocation5 + $0x18] sm:$0xff] %v163
    %180 = vst [vmem:[#allocation5 + $0x20] sm:$0xff] %v164
    %181 = vst [vmem:[#allocation5 + $0x28] sm:$0xff] %v165
    %182 = vst [vmem:[#allocation5 + $0x30] sm:$0xff] %v166
    %183 = vst [vmem:[#allocation5 + $0x38] sm:$0xff] %v167
    %184 = vst [vmem:[#allocation5 + $0x40] sm:$0xff] %v168
    %185 = vst [vmem:[#allocation5 + $0x48] sm:$0xff] %v169
    %186 = vst [vmem:[#allocation5 + $0x50] sm:$0xff] %v170
    %187 = vst [vmem:[#allocation5 + $0x58] sm:$0xff] %v171
    %188 = vst [vmem:[#allocation5 + $0x60] sm:$0xff] %v172
    %189 = vst [vmem:[#allocation5 + $0x68] sm:$0xff] %v173
    %190 = vst [vmem:[#allocation5 + $0x70] sm:$0xff] %v174
    %191 = vst [vmem:[#allocation5 + $0x78] sm:$0xff] %v175
    // Predicated region
    $region18: #{tpu_custom_call.1} parent=1 // pred_check
      _
    $region19: #{tpu_custom_call.1} parent=1 // pred_check_branch
      %193 = sbr.rel (0) target = $region21
    $region20: #{tpu_custom_call.1} parent=1 // pred_region
      %s195 = ssub.s32 2048, 2048
      %196 = vsyncadd [#allocation4], %s195
      %s197 = sshll.u32 [#allocation5], 4
      %s198 = int_to_ptr.vmem [resolvable:$true] %s197
      %203 = dma.vmem_to_hbm [thread:$0]  %s198, 2048, %s3, [#allocation4], 256, 256, 16
    $region21: #{tpu_custom_call.1} parent=1 // pred_fallthru
      _
    // Predicated region
    $region22: #{tpu_custom_call.1} parent=1 // pred_check
      _
    $region23: #{tpu_custom_call.1} parent=1 // pred_check_branch
      %205 = sbr.rel (0) target = $region25
    $region24: #{tpu_custom_call.1} parent=1 // pred_region
      %206 = dma.done [#allocation4], 2048
    $region25: #{tpu_custom_call.1} parent=1 // pred_fallthru
      _
    %207 = vsyncpa [#allocation3], 1
    %208 = vsyncpa [#allocation4], 1

</llo_original>
